<compile_context>
chip_gen: v6e
topology: v6e:2x2x1
jax: 0.10.0
libtpu: 0.0.40
codegen_flags: <defaults>
</compile_context>

<pallas_src>
import functools
import numpy as np
import jax
import jax.numpy as jnp
from jax.experimental import pallas as pl
from jax.experimental.pallas import tpu as pltpu

# ----------------------- scaled-down CNNSA configuration -----------------------
N_CHANNELS    = 16               # torch default: 128  (scaled down for a small demo)
HIDDEN        = 2 * N_CHANNELS   # torch: 256
N_HEADS       = 8
INTERMEDIATE  = 4 * HIDDEN       # torch: 1024
N_BERT_LAYERS = 2
N_MELS        = 128              # must stay 128: seven freq-halvings -> 1
N_FRAMES      = 32
BATCH         = 2
BN_EPS        = 1e-5
LN_EPS        = 1e-12
CIN_PAD       = 8                # layer-1 single input channel zero-padded to 8

_rng = np.random.RandomState(0)

_COMPILER = pltpu.CompilerParams(
    dimension_semantics=("parallel",),
    vmem_limit_bytes=32 * 1024 * 1024,
)


# =============================== Pallas kernels ================================

def _db_bn_kernel(x_ref, o_ref, *, scale, bias):
    # AmplitudeToDB (power, top_db=None): 10*log10(clamp(x, 1e-10)), fused with
    # the (eval-mode) BatchNorm2d(1) affine.
    x = jnp.maximum(x_ref[...], 1e-10)
    db = np.float32(10.0 / np.log(10.0)) * jnp.log(x)
    o_ref[...] = db * scale + bias


def _res2d_kernel(*args, sh, sw, Ho, Wo, Wo_pad, Cin, Cout):
    """Fused Res_2d: relu(bn2(conv2(relu(bn1(conv1(x))))) + bn3(conv3(x))).

    Inputs are the sh*sw stride-phases of the zero-padded NHWC activation; each
    3x3 conv is 9 accumulated (M, Cin) x (Cin, Cout) matmuls (BN scale folded
    into the bf16 weights).  conv1's output lives only in a VMEM scratch.
    """
    nph = sh * sw
    ph = args[:nph]
    w1_ref, b1_ref, w3_ref, w2_ref, b23_ref, o_ref, hpad_ref = args[nph:]
    M = Ho * Wo_pad

    def tap(kh, kw):
        a, b = kh % sh, kw % sw
        r = ph[a * sw + b]
        dh, dw = kh // sh, kw // sw
        t = r[0, dh:dh + Ho, dw:dw + Wo_pad, :]          # (Ho, Wo_pad, Cin) f32
        return t.reshape(M, Cin)

    def conv_acc(acc, w_ref):
        for kh in range(3):
            for kw in range(3):
                t = tap(kh, kw)
                acc = acc + jnp.dot(t.astype(jnp.bfloat16), w_ref[kh * 3 + kw],
                                    preferred_element_type=jnp.float32)
        return acc

    # conv1 + bn1 + relu (BN scale already folded into weights).
    h = jnp.maximum(conv_acc(jnp.zeros((M, Cout), jnp.float32), w1_ref)
                    + b1_ref[...], 0.0)

    # Zero-padded copy of h for the stride-1 conv2 (junk columns >= Wo stay 0).
    hpad_ref[...] = jnp.zeros_like(hpad_ref)
    hpad_ref[1:Ho + 1, 1:Wo + 1, :] = h.reshape(Ho, Wo_pad, Cout)[:, :Wo, :]

    # Shortcut conv3 (same input taps) and conv2 share one f32 accumulator.
    acc = conv_acc(jnp.zeros((M, Cout), jnp.float32), w3_ref)
    for kh in range(3):
        for kw in range(3):
            t = hpad_ref[kh:kh + Ho, kw:kw + Wo_pad, :].reshape(M, Cout)
            acc = acc + jnp.dot(t.astype(jnp.bfloat16), w2_ref[kh * 3 + kw],
                                preferred_element_type=jnp.float32)
    out = jnp.maximum(acc + b23_ref[...], 0.0)
    o_ref[0] = out.reshape(Ho, Wo_pad, Cout)[:, :Wo, :]


def _erf(x):
    # Abramowitz & Stegun 7.1.26 polynomial erf (|err| < 1.5e-7); exp lowers on EUP.
    a1, a2, a3, a4, a5 = 0.254829592, -0.284496736, 1.421413741, -1.453152027, 1.061405429
    p = 0.3275911
    ax = jnp.abs(x)
    t = 1.0 / (1.0 + p * ax)
    poly = ((((a5 * t + a4) * t + a3) * t + a2) * t + a1) * t
    y = 1.0 - poly * jnp.exp(-ax * ax)
    return jnp.where(x >= 0, y, -y)


def _gelu(x):
    # torch.erf-based GELU approximated with an erf polynomial (|err|<1.5e-7).
    return 0.5 * x * (1.0 + _erf(x * np.float32(1.0 / np.sqrt(2.0))))


def _layernorm(x, g, b):
    mu = jnp.mean(x, axis=-1, keepdims=True)
    var = jnp.mean((x - mu) ** 2, axis=-1, keepdims=True)
    return (x - mu) * jax.lax.rsqrt(var + LN_EPS) * g + b


def _bert_kernel(x_ref, wqkv_ref, bqkv_ref, wo_ref, bo_ref, g1_ref, be1_ref,
                 w1_ref, b1_ref, w2_ref, b2_ref, g2_ref, be2_ref, o_ref,
                 *, num_heads, num_layers):
    """Both BERT layers (self-attn + add&LN + FFN/GELU + add&LN) fully in VMEM."""
    x = x_ref[0]                                          # (L, D) f32
    L, D = x.shape
    dh = D // num_heads
    inv_sqrt_dh = np.float32(1.0 / np.sqrt(dh))
    for li in range(num_layers):                          # static unroll (2 layers)
        # packed QKV projection: one (L,D)x(D,3D) matmul
        qkv = jnp.dot(x.astype(jnp.bfloat16), wqkv_ref[li],
                      preferred_element_type=jnp.float32) + bqkv_ref[li]
        q, k, v = qkv[:, :D], qkv[:, D:2 * D], qkv[:, 2 * D:]
        ctxs = []
        for h in range(num_heads):                        # unrolled heads (tiny dh)
            sl = slice(h * dh, (h + 1) * dh)
            qh, kh, vh = q[:, sl], k[:, sl], v[:, sl]
            s = jax.lax.dot_general(qh, kh, (((1,), (1,)), ((), ())),
                                    preferred_element_type=jnp.float32) * inv_sqrt_dh
            s = s - jnp.max(s, axis=-1, keepdims=True)
            e = jnp.exp(s)
            pr = e * pl.reciprocal(jnp.sum(e, axis=-1, keepdims=True), approx=True)
            ctxs.append(jnp.dot(pr, vh, preferred_element_type=jnp.float32))
        ctx = jnp.concatenate(ctxs, axis=-1)              # (L, D)
        attn = jnp.dot(ctx.astype(jnp.bfloat16), wo_ref[li],
                       preferred_element_type=jnp.float32) + bo_ref[li]
        x = _layernorm(x + attn, g1_ref[li], be1_ref[li])
        hh = jnp.dot(x.astype(jnp.bfloat16), w1_ref[li],
                     preferred_element_type=jnp.float32) + b1_ref[li]
        hh = _gelu(hh)
        y = jnp.dot(hh.astype(jnp.bfloat16), w2_ref[li],
                    preferred_element_type=jnp.float32) + b2_ref[li]
        x = _layernorm(x + y, g2_ref[li], be2_ref[li])
    o_ref[0] = x


# ============================== kernel wrappers ================================

def _bcast_spec(a):
    nd = a.ndim
    return pl.BlockSpec(a.shape, lambda b, _nd=nd: (0,) * _nd)


def db_bn(x, scale, bias):
    # whole (B, n_mels, frames) spectrogram in one block (pure per-step overhead
    # otherwise).
    return pl.pallas_call(
        functools.partial(_db_bn_kernel, scale=scale, bias=bias),
        out_shape=jax.ShapeDtypeStruct(x.shape, jnp.float32),
        grid=(1,),
        in_specs=[pl.BlockSpec(x.shape, lambda i: (0, 0, 0))],
        out_specs=pl.BlockSpec(x.shape, lambda i: (0, 0, 0)),
        compiler_params=_COMPILER,
    )(x)


def res_2d(x, p, stride):
    """One fused pallas_call per Res_2d block, grid over batch (parallel)."""
    B, H, W, Cin = x.shape
    sh, sw = stride
    Cout = p['b1'].shape[-1]
    Ho = -(-H // sh)
    Wo = -(-W // sw)
    Wo_pad = max(8, ((Wo + 7) // 8) * 8)      # 8-aligned sublane width in-kernel
    h_need = sh * (Ho - 1) + 3
    w_need = sw * (Wo_pad - 1) + 3
    xpad = jnp.pad(x, ((0, 0),
                       (1, max(0, h_need - H - 1)),
                       (1, max(0, w_need - W - 1)),
                       (0, 0)))
    # zero-copy-sized stride-phase decomposition (no 9x im2col expansion)
    phases = [xpad[:, a::sh, b::sw, :] for a in range(sh) for b in range(sw)]
    kern = functools.partial(_res2d_kernel, sh=sh, sw=sw, Ho=Ho, Wo=Wo,
                             Wo_pad=Wo_pad, Cin=Cin, Cout=Cout)
    in_specs = ([pl.BlockSpec((1,) + ph.shape[1:], lambda b: (b, 0, 0, 0))
                 for ph in phases]
                + [_bcast_spec(p[k]) for k in ('w1', 'b1', 'w3', 'w2', 'b23')])
    return pl.pallas_call(
        kern,
        out_shape=jax.ShapeDtypeStruct((B, Ho, Wo, Cout), jnp.float32),
        grid=(B,),
        in_specs=in_specs,
        out_specs=pl.BlockSpec((1, Ho, Wo, Cout), lambda b: (b, 0, 0, 0)),
        scratch_shapes=[pltpu.VMEM((Ho + 2, Wo_pad + 2, Cout), jnp.float32)],
        compiler_params=_COMPILER,
    )(*phases, p['w1'], p['b1'], p['w3'], p['w2'], p['b23'])


def bert_encoder(x, p):
    B, L, D = x.shape
    names = ('wqkv', 'bqkv', 'wo', 'bo', 'ln1_g', 'ln1_b',
             'w1', 'b1', 'w2', 'b2', 'ln2_g', 'ln2_b')
    ws = [p[n] for n in names]
    return pl.pallas_call(
        functools.partial(_bert_kernel, num_heads=N_HEADS, num_layers=N_BERT_LAYERS),
        out_shape=jax.ShapeDtypeStruct((B, L, D), jnp.float32),
        grid=(B,),
        in_specs=[pl.BlockSpec((1, L, D), lambda b: (b, 0, 0))]
                 + [_bcast_spec(a) for a in ws],
        out_specs=pl.BlockSpec((1, L, D), lambda b: (b, 0, 0)),
        compiler_params=_COMPILER,
    )(x, *ws)


# ============================== parameter init =================================

def _randn(shape, scale):
    return jnp.asarray(_rng.randn(*shape).astype(np.float32) * scale)


def _bn_params(c):
    gamma = jnp.asarray(1.0 + 0.1 * _rng.randn(c), dtype=jnp.float32)
    beta  = jnp.asarray(0.1 * _rng.randn(c), dtype=jnp.float32)
    mean  = jnp.asarray(0.1 * _rng.randn(c), dtype=jnp.float32)
    var   = jnp.asarray(0.75 + 0.5 * _rng.rand(c), dtype=jnp.float32)
    return gamma, beta, mean, var


def _conv_bn_folded(cin, cout, cin_pad=None):
    # Conv2d(cin, cout, 3, padding=1) weight + bias, eval-mode BN fully folded:
    # y = x @ (W*scale) + (beta + (b - mean)*scale)
    w = _randn((3, 3, cin, cout), 1.0 / np.sqrt(9 * cin))
    b = _randn((cout,), 0.05)
    gamma, beta, mean, var = _bn_params(cout)
    scale = gamma / jnp.sqrt(var + BN_EPS)
    bias = beta + (b - mean) * scale
    wf = (w * scale).reshape(9, cin, cout)
    if cin_pad is not None and cin_pad > cin:
        wf = jnp.pad(wf, ((0, 0), (0, cin_pad - cin), (0, 0)))  # zero rows: exact
    return wf.astype(jnp.bfloat16), bias.reshape(1, cout).astype(jnp.float32)


def init_res2d(cin, cout, cin_pad=None):
    w1, b1 = _conv_bn_folded(cin, cout, cin_pad)
    w2, b2 = _conv_bn_folded(cout, cout)
    w3, b3 = _conv_bn_folded(cin, cout, cin_pad)
    return {'w1': w1, 'b1': b1, 'w2': w2, 'w3': w3, 'b23': b2 + b3}


def init_bert(d, inter, n_layers):
    def stackr(shape, scale=0.02):
        return jnp.stack([_randn(shape, scale) for _ in range(n_layers)], axis=0)

    def stackln(shape):
        g = jnp.stack([jnp.asarray(1.0 + 0.05 * _rng.randn(*shape), jnp.float32)
                       for _ in range(n_layers)], axis=0)
        b = jnp.stack([jnp.asarray(0.05 * _rng.randn(*shape), jnp.float32)
                       for _ in range(n_layers)], axis=0)
        return g, b

    wqkv = jnp.concatenate([stackr((d, d)), stackr((d, d)), stackr((d, d))], axis=-1)
    bqkv = jnp.concatenate([stackr((1, d)), stackr((1, d)), stackr((1, d))], axis=-1)
    wo, bo = stackr((d, d)), stackr((1, d))
    w1, b1 = stackr((d, inter)), stackr((1, inter))
    w2, b2 = stackr((inter, d)), stackr((1, d))
    ln1_g, ln1_b = stackln((1, d))
    ln2_g, ln2_b = stackln((1, d))
    return {'wqkv': wqkv.astype(jnp.bfloat16), 'bqkv': bqkv,
            'wo': wo.astype(jnp.bfloat16), 'bo': bo,
            'ln1_g': ln1_g, 'ln1_b': ln1_b,
            'w1': w1.astype(jnp.bfloat16), 'b1': b1,
            'w2': w2.astype(jnp.bfloat16), 'b2': b2,
            'ln2_g': ln2_g, 'ln2_b': ln2_b}


def init_params():
    # spec_bn = BatchNorm2d(1), eval mode, folded into a scalar affine.
    g = 1.0 + 0.1 * float(_rng.randn()); b = 0.1 * float(_rng.randn())
    m = 0.1 * float(_rng.randn());       v = 0.75 + 0.5 * float(_rng.rand())
    spec_scale = float(g / np.sqrt(v + BN_EPS))
    spec_bias = float(b - m * spec_scale)
    chans = [(1, N_CHANNELS), (N_CHANNELS, N_CHANNELS), (N_CHANNELS, 2 * N_CHANNELS)] \
            + [(2 * N_CHANNELS, 2 * N_CHANNELS)] * 4
    res = [init_res2d(ci, co, cin_pad=(CIN_PAD if ci == 1 else None))
           for ci, co in chans]
    bert = init_bert(HIDDEN, INTERMEDIATE, N_BERT_LAYERS)
    # get_cls: np.random.seed(0); np.random.random((1, hidden)), repeated per batch row.
    vec_cls = jnp.asarray(np.random.RandomState(0).random_sample((1, HIDDEN)).astype(np.float32))
    return {'spec_scale': spec_scale, 'spec_bias': spec_bias,
            'res': res, 'bert': bert, 'vec_cls': vec_cls}


# ================================= forward =====================================

def cnnsa_forward(spec, params):
    # TODO(synk): get_spec (mp3 loading + torchaudio.MelSpectrogram) is host I/O;
    # the pipeline starts from the mel power spectrogram (B, n_mels, n_frames).
    x = db_bn(spec, params['spec_scale'], params['spec_bias'])     # AmplitudeToDB + spec_bn
    x = x[..., None]                                               # NHWC: (B, 128, T, 1)
    x = jnp.pad(x, ((0, 0), (0, 0), (0, 0), (0, CIN_PAD - 1)))     # 1 -> 8 zero channels (exact)
    strides = [(2, 2), (2, 2), (2, 2), (2, 1), (2, 1), (2, 1), (2, 1)]
    for p, s in zip(params['res'], strides):
        x = res_2d(x, p, s)                                        # layer1 .. layer7 (fused)
    x = x[:, 0, :, :]                                              # squeeze(freq) -> (B, T/8, D)
    B = x.shape[0]
    cls = jnp.broadcast_to(params['vec_cls'][None, :, :], (B, 1, HIDDEN))
    x = jnp.concatenate([cls, x], axis=1)                          # append_cls
    x = bert_encoder(x, params['bert'])                            # BertEncoder (2 layers, fused)
    return x                                                       # last encoder layer (B, L+1, D)


if __name__ == "__main__":
    params = init_params()
    key = jax.random.PRNGKey(0)
    # mel power spectrogram (non-negative), small shapes: B=2, n_mels=128, frames=32
    spec = jax.random.uniform(key, (BATCH, N_MELS, N_FRAMES),
                              dtype=jnp.float32, minval=0.0, maxval=10.0)
    out = cnnsa_forward(spec, params)
    out = jax.block_until_ready(out)
    assert out.shape == (BATCH, N_FRAMES // 8 + 1, HIDDEN), out.shape
    assert bool(jnp.all(jnp.isfinite(out)))
    print("KERNEL_OK")
</pallas_src>

<mosaic_0001>
module attributes {stable_mosaic.version = 11 : i64} {
  func.func @_db_bn_kernel(%arg0: i32, %arg1: memref<2x128x32xf32, #tpu.memory_space<vmem>>, %arg2: memref<2x128x32xf32, #tpu.memory_space<vmem>>) attributes {dimension_semantics = [#tpu.dimension_semantics<parallel>], iteration_bounds = array<i64: 1>, scalar_prefetch = 0 : i64, scratch_operands = 0 : i64, tpu.core_type = #tpu.core_type<tc>, window_params = [{pipeline_mode = #tpu.pipeline_mode<synchronous>, transform_indices = @transform_0, window_bounds = array<i64: 2, 128, 32>}, {pipeline_mode = #tpu.pipeline_mode<synchronous>, transform_indices = @transform_1, window_bounds = array<i64: 2, 128, 32>}]} {
    %c0 = arith.constant 0 : index
    %c0_0 = arith.constant 0 : index
    %c0_1 = arith.constant 0 : index
    %0 = vector.load %arg1[%c0, %c0_0, %c0_1] : memref<2x128x32xf32, #tpu.memory_space<vmem>>, vector<2x128x32xf32>
    %cst = arith.constant 1.000000e-10 : f32
    %1 = vector.broadcast %cst : f32 to vector<2x128x32xf32>
    %2 = arith.maximumf %0, %1 : vector<2x128x32xf32>
    %3 = math.log %2 : vector<2x128x32xf32>
    %cst_2 = arith.constant 4.34294462 : f32
    %4 = vector.broadcast %cst_2 : f32 to vector<2x128x32xf32>
    %5 = arith.mulf %4, %3 : vector<2x128x32xf32>
    %cst_3 = arith.constant 1.19951618 : f32
    %6 = vector.broadcast %cst_3 : f32 to vector<2x128x32xf32>
    %7 = arith.mulf %5, %6 : vector<2x128x32xf32>
    %cst_4 = arith.constant -0.0773854851 : f32
    %8 = vector.broadcast %cst_4 : f32 to vector<2x128x32xf32>
    %9 = arith.addf %7, %8 : vector<2x128x32xf32>
    %c0_5 = arith.constant 0 : index
    %c0_6 = arith.constant 0 : index
    %c0_7 = arith.constant 0 : index
    %10 = vector.load %arg2[%c0_5, %c0_6, %c0_7] : memref<2x128x32xf32, #tpu.memory_space<vmem>>, vector<2x128x32xf32>
    tpu.vector_store %arg2[%c0_5, %c0_6, %c0_7], %9 {strides = array<i32>} : memref<2x128x32xf32, #tpu.memory_space<vmem>>, vector<2x128x32xf32>,
    return
  }
  func.func @transform_0(%arg0: i32) -> (i32, i32, i32) {
    %c0_i32 = arith.constant 0 : i32
    %c0_i32_0 = arith.constant 0 : i32
    %c0_i32_1 = arith.constant 0 : i32
    %c0_i32_2 = arith.constant 0 : i32
    return %c0_i32, %c0_i32_0, %c0_i32_1 : i32, i32, i32
  }
  func.func @transform_1(%arg0: i32) -> (i32, i32, i32) {
    %c0_i32 = arith.constant 0 : i32
    %c0_i32_0 = arith.constant 0 : i32
    %c0_i32_1 = arith.constant 0 : i32
    %c0_i32_2 = arith.constant 0 : i32
    return %c0_i32, %c0_i32_0, %c0_i32_1 : i32, i32, i32
  }
}

</mosaic_0001>

<llo_original>
// kernel: tpu_custom_call.1
$region0: #{tpu_custom_call.1}
  #allocation0 [shape = 'u32[]', space=smem, size = 0x4, offset = 0x4, fixed_abs, tag = 'smem constant byte address 0x4 - core index']
  #allocation1 [shape = 'u32[144,128]{1,0:T(1,128)}', space=vmem, size = 0x12000, scoped, tag = 'internal scratch']
  %s0 = inlined_call_operand.vmem [shape: f32[2,128,32], index: 0, kind: input, shape index: {}]
  %s1 = inlined_call_operand.vmem [shape: f32[2,128,32], index: 1, kind: output, shape index: {}]
  %s2 = sld [smem:[#allocation0]]
  $region14: #{tpu_custom_call.1} parent=0
    _
  %s4 = ssub.s32 1, %s2
  %s5 = scalar_select 0, %s4, %s2
  // Predicated region
  $region2: #{tpu_custom_call.1} parent=0 // pred_check
    _
  $region3: #{tpu_custom_call.1} parent=0 // pred_check_branch
    %7 = sbr.rel (0) target = $region5
  $region4: #{tpu_custom_call.1} parent=0 // pred_region
    _
  $region5: #{tpu_custom_call.1} parent=0 // pred_fallthru
    _
  %v8 = vld [vmem:[%s0] sm:$0xff]
  %v9 = vld [vmem:[%s0 + $0x8] sm:$0xff]
  %v10 = vld [vmem:[%s0 + $0x10] sm:$0xff]
  %v11 = vld [vmem:[%s0 + $0x18] sm:$0xff]
  %v12 = vld [vmem:[%s0 + $0x20] sm:$0xff]
  %v13 = vld [vmem:[%s0 + $0x28] sm:$0xff]
  %v14 = vld [vmem:[%s0 + $0x30] sm:$0xff]
  %v15 = vld [vmem:[%s0 + $0x38] sm:$0xff]
  %v16 = vld [vmem:[%s0 + $0x40] sm:$0xff]
  %v17 = vld [vmem:[%s0 + $0x48] sm:$0xff]
  %v18 = vld [vmem:[%s0 + $0x50] sm:$0xff]
  %v19 = vld [vmem:[%s0 + $0x58] sm:$0xff]
  %v20 = vld [vmem:[%s0 + $0x60] sm:$0xff]
  %v21 = vld [vmem:[%s0 + $0x68] sm:$0xff]
  %v22 = vld [vmem:[%s0 + $0x70] sm:$0xff]
  %v23 = vld [vmem:[%s0 + $0x78] sm:$0xff]
  %v24 = vld [vmem:[%s0 + $0x80] sm:$0xff]
  %v25 = vld [vmem:[%s0 + $0x88] sm:$0xff]
  %v26 = vld [vmem:[%s0 + $0x90] sm:$0xff]
  %v27 = vld [vmem:[%s0 + $0x98] sm:$0xff]
  %v28 = vld [vmem:[%s0 + $0xa0] sm:$0xff]
  %v29 = vld [vmem:[%s0 + $0xa8] sm:$0xff]
  %v30 = vld [vmem:[%s0 + $0xb0] sm:$0xff]
  %v31 = vld [vmem:[%s0 + $0xb8] sm:$0xff]
  %v32 = vld [vmem:[%s0 + $0xc0] sm:$0xff]
  %v33 = vld [vmem:[%s0 + $0xc8] sm:$0xff]
  %v34 = vld [vmem:[%s0 + $0xd0] sm:$0xff]
  %v35 = vld [vmem:[%s0 + $0xd8] sm:$0xff]
  %v36 = vld [vmem:[%s0 + $0xe0] sm:$0xff]
  %v37 = vld [vmem:[%s0 + $0xe8] sm:$0xff]
  %v38 = vld [vmem:[%s0 + $0xf0] sm:$0xff]
  %v39 = vld [vmem:[%s0 + $0xf8] sm:$0xff]
  %v40 = vmax.f32 %v8, 1e-10
  %v41 = vmax.f32 %v9, 1e-10
  %v42 = vmax.f32 %v10, 1e-10
  %v43 = vmax.f32 %v11, 1e-10
  %v44 = vmax.f32 %v12, 1e-10
  %v45 = vmax.f32 %v13, 1e-10
  %v46 = vmax.f32 %v14, 1e-10
  %v47 = vmax.f32 %v15, 1e-10
  %v48 = vmax.f32 %v16, 1e-10
  %v49 = vmax.f32 %v17, 1e-10
  %v50 = vmax.f32 %v18, 1e-10
  %v51 = vmax.f32 %v19, 1e-10
  %v52 = vmax.f32 %v20, 1e-10
  %v53 = vmax.f32 %v21, 1e-10
  %v54 = vmax.f32 %v22, 1e-10
  %v55 = vmax.f32 %v23, 1e-10
  %v56 = vmax.f32 %v24, 1e-10
  %v57 = vmax.f32 %v25, 1e-10
  %v58 = vmax.f32 %v26, 1e-10
  %v59 = vmax.f32 %v27, 1e-10
  %v60 = vmax.f32 %v28, 1e-10
  %v61 = vmax.f32 %v29, 1e-10
  %v62 = vmax.f32 %v30, 1e-10
  %v63 = vmax.f32 %v31, 1e-10
  %v64 = vmax.f32 %v32, 1e-10
  %v65 = vmax.f32 %v33, 1e-10
  %v66 = vmax.f32 %v34, 1e-10
  %v67 = vmax.f32 %v35, 1e-10
  %v68 = vmax.f32 %v36, 1e-10
  %v69 = vmax.f32 %v37, 1e-10
  %v70 = vmax.f32 %v38, 1e-10
  %v71 = vmax.f32 %v39, 1e-10
  %v72 = vlog2.pop %v40
  %v73 = vmul.f32 %v72, 0.6931472
  %v74 = vlog2.pop %v41
  %v75 = vmul.f32 %v74, 0.6931472
  %v76 = vlog2.pop %v42
  %v77 = vmul.f32 %v76, 0.6931472
  %v78 = vlog2.pop %v43
  %v79 = vmul.f32 %v78, 0.6931472
  %v80 = vlog2.pop %v44
  %v81 = vmul.f32 %v80, 0.6931472
  %v82 = vlog2.pop %v45
  %v83 = vmul.f32 %v82, 0.6931472
  %v84 = vlog2.pop %v46
  %v85 = vmul.f32 %v84, 0.6931472
  %v86 = vlog2.pop %v47
  %v87 = vmul.f32 %v86, 0.6931472
  %v88 = vlog2.pop %v48
  %v89 = vmul.f32 %v88, 0.6931472
  %v90 = vlog2.pop %v49
  %v91 = vmul.f32 %v90, 0.6931472
  %v92 = vlog2.pop %v50
  %v93 = vmul.f32 %v92, 0.6931472
  %v94 = vlog2.pop %v51
  %v95 = vmul.f32 %v94, 0.6931472
  %v96 = vlog2.pop %v52
  %v97 = vmul.f32 %v96, 0.6931472
  %v98 = vlog2.pop %v53
  %v99 = vmul.f32 %v98, 0.6931472
  %v100 = vlog2.pop %v54
  %v101 = vmul.f32 %v100, 0.6931472
  %v102 = vlog2.pop %v55
  %v103 = vmul.f32 %v102, 0.6931472
  %v104 = vlog2.pop %v56
  %v105 = vmul.f32 %v104, 0.6931472
  %v106 = vlog2.pop %v57
  %v107 = vmul.f32 %v106, 0.6931472
  %v108 = vlog2.pop %v58
  %v109 = vmul.f32 %v108, 0.6931472
  %v110 = vlog2.pop %v59
  %v111 = vmul.f32 %v110, 0.6931472
  %v112 = vlog2.pop %v60
  %v113 = vmul.f32 %v112, 0.6931472
  %v114 = vlog2.pop %v61
  %v115 = vmul.f32 %v114, 0.6931472
  %v116 = vlog2.pop %v62
  %v117 = vmul.f32 %v116, 0.6931472
  %v118 = vlog2.pop %v63
  %v119 = vmul.f32 %v118, 0.6931472
  %v120 = vlog2.pop %v64
  %v121 = vmul.f32 %v120, 0.6931472
  %v122 = vlog2.pop %v65
  %v123 = vmul.f32 %v122, 0.6931472
  %v124 = vlog2.pop %v66
  %v125 = vmul.f32 %v124, 0.6931472
  %v126 = vlog2.pop %v67
  %v127 = vmul.f32 %v126, 0.6931472
  %v128 = vlog2.pop %v68
  %v129 = vmul.f32 %v128, 0.6931472
  %v130 = vlog2.pop %v69
  %v131 = vmul.f32 %v130, 0.6931472
  %v132 = vlog2.pop %v70
  %v133 = vmul.f32 %v132, 0.6931472
  %v134 = vlog2.pop %v71
  %v135 = vmul.f32 %v134, 0.6931472
  %v136 = vmul.f32 %v73, 4.3429446
  %v137 = vmul.f32 %v75, 4.3429446
  %v138 = vmul.f32 %v77, 4.3429446
  %v139 = vmul.f32 %v79, 4.3429446
  %v140 = vmul.f32 %v81, 4.3429446
  %v141 = vmul.f32 %v83, 4.3429446
  %v142 = vmul.f32 %v85, 4.3429446
  %v143 = vmul.f32 %v87, 4.3429446
  %v144 = vmul.f32 %v89, 4.3429446
  %v145 = vmul.f32 %v91, 4.3429446
  %v146 = vmul.f32 %v93, 4.3429446
  %v147 = vmul.f32 %v95, 4.3429446
  %v148 = vmul.f32 %v97, 4.3429446
  %v149 = vmul.f32 %v99, 4.3429446
  %v150 = vmul.f32 %v101, 4.3429446
  %v151 = vmul.f32 %v103, 4.3429446
  %v152 = vmul.f32 %v105, 4.3429446
  %v153 = vmul.f32 %v107, 4.3429446
  %v154 = vmul.f32 %v109, 4.3429446
  %v155 = vmul.f32 %v111, 4.3429446
  %v156 = vmul.f32 %v113, 4.3429446
  %v157 = vmul.f32 %v115, 4.3429446
  %v158 = vmul.f32 %v117, 4.3429446
  %v159 = vmul.f32 %v119, 4.3429446
  %v160 = vmul.f32 %v121, 4.3429446
  %v161 = vmul.f32 %v123, 4.3429446
  %v162 = vmul.f32 %v125, 4.3429446
  %v163 = vmul.f32 %v127, 4.3429446
  %v164 = vmul.f32 %v129, 4.3429446
  %v165 = vmul.f32 %v131, 4.3429446
  %v166 = vmul.f32 %v133, 4.3429446
  %v167 = vmul.f32 %v135, 4.3429446
  %v168 = vmul.f32 %v136, 1.1995162
  %v169 = vmul.f32 %v137, 1.1995162
  %v170 = vmul.f32 %v138, 1.1995162
  %v171 = vmul.f32 %v139, 1.1995162
  %v172 = vmul.f32 %v140, 1.1995162
  %v173 = vmul.f32 %v141, 1.1995162
  %v174 = vmul.f32 %v142, 1.1995162
  %v175 = vmul.f32 %v143, 1.1995162
  %v176 = vmul.f32 %v144, 1.1995162
  %v177 = vmul.f32 %v145, 1.1995162
  %v178 = vmul.f32 %v146, 1.1995162
  %v179 = vmul.f32 %v147, 1.1995162
  %v180 = vmul.f32 %v148, 1.1995162
  %v181 = vmul.f32 %v149, 1.1995162
  %v182 = vmul.f32 %v150, 1.1995162
  %v183 = vmul.f32 %v151, 1.1995162
  %v184 = vmul.f32 %v152, 1.1995162
  %v185 = vmul.f32 %v153, 1.1995162
  %v186 = vmul.f32 %v154, 1.1995162
  %v187 = vmul.f32 %v155, 1.1995162
  %v188 = vmul.f32 %v156, 1.1995162
  %v189 = vmul.f32 %v157, 1.1995162
  %v190 = vmul.f32 %v158, 1.1995162
  %v191 = vmul.f32 %v159, 1.1995162
  %v192 = vmul.f32 %v160, 1.1995162
  %v193 = vmul.f32 %v161, 1.1995162
  %v194 = vmul.f32 %v162, 1.1995162
  %v195 = vmul.f32 %v163, 1.1995162
  %v196 = vmul.f32 %v164, 1.1995162
  %v197 = vmul.f32 %v165, 1.1995162
  %v198 = vmul.f32 %v166, 1.1995162
  %v199 = vmul.f32 %v167, 1.1995162
  %v200 = vadd.f32 %v168, -0.077385485
  %v201 = vadd.f32 %v169, -0.077385485
  %v202 = vadd.f32 %v170, -0.077385485
  %v203 = vadd.f32 %v171, -0.077385485
  %v204 = vadd.f32 %v172, -0.077385485
  %v205 = vadd.f32 %v173, -0.077385485
  %v206 = vadd.f32 %v174, -0.077385485
  %v207 = vadd.f32 %v175, -0.077385485
  %v208 = vadd.f32 %v176, -0.077385485
  %v209 = vadd.f32 %v177, -0.077385485
  %v210 = vadd.f32 %v178, -0.077385485
  %v211 = vadd.f32 %v179, -0.077385485
  %v212 = vadd.f32 %v180, -0.077385485
  %v213 = vadd.f32 %v181, -0.077385485
  %v214 = vadd.f32 %v182, -0.077385485
  %v215 = vadd.f32 %v183, -0.077385485
  %v216 = vadd.f32 %v184, -0.077385485
  %v217 = vadd.f32 %v185, -0.077385485
  %v218 = vadd.f32 %v186, -0.077385485
  %v219 = vadd.f32 %v187, -0.077385485
  %v220 = vadd.f32 %v188, -0.077385485
  %v221 = vadd.f32 %v189, -0.077385485
  %v222 = vadd.f32 %v190, -0.077385485
  %v223 = vadd.f32 %v191, -0.077385485
  %v224 = vadd.f32 %v192, -0.077385485
  %v225 = vadd.f32 %v193, -0.077385485
  %v226 = vadd.f32 %v194, -0.077385485
  %v227 = vadd.f32 %v195, -0.077385485
  %v228 = vadd.f32 %v196, -0.077385485
  %v229 = vadd.f32 %v197, -0.077385485
  %v230 = vadd.f32 %v198, -0.077385485
  %v231 = vadd.f32 %v199, -0.077385485
  %vm232 = vcmask 261120
  %233 = vst.msk [vmem:[%s1] sm:$0xff] %vm232, %v200
  %234 = vst.msk [vmem:[%s1 + $0x8] sm:$0xff] %vm232, %v201
  %235 = vst.msk [vmem:[%s1 + $0x10] sm:$0xff] %vm232, %v202
  %236 = vst.msk [vmem:[%s1 + $0x18] sm:$0xff] %vm232, %v203
  %237 = vst.msk [vmem:[%s1 + $0x20] sm:$0xff] %vm232, %v204
  %238 = vst.msk [vmem:[%s1 + $0x28] sm:$0xff] %vm232, %v205
  %239 = vst.msk [vmem:[%s1 + $0x30] sm:$0xff] %vm232, %v206
  %240 = vst.msk [vmem:[%s1 + $0x38] sm:$0xff] %vm232, %v207
  %241 = vst.msk [vmem:[%s1 + $0x40] sm:$0xff] %vm232, %v208
  %242 = vst.msk [vmem:[%s1 + $0x48] sm:$0xff] %vm232, %v209
  %243 = vst.msk [vmem:[%s1 + $0x50] sm:$0xff] %vm232, %v210
  %244 = vst.msk [vmem:[%s1 + $0x58] sm:$0xff] %vm232, %v211
  %245 = vst.msk [vmem:[%s1 + $0x60] sm:$0xff] %vm232, %v212
  %246 = vst.msk [vmem:[%s1 + $0x68] sm:$0xff] %vm232, %v213
  %247 = vst.msk [vmem:[%s1 + $0x70] sm:$0xff] %vm232, %v214
  %248 = vst.msk [vmem:[%s1 + $0x78] sm:$0xff] %vm232, %v215
  %249 = vst.msk [vmem:[%s1 + $0x80] sm:$0xff] %vm232, %v216
  %250 = vst.msk [vmem:[%s1 + $0x88] sm:$0xff] %vm232, %v217
  %251 = vst.msk [vmem:[%s1 + $0x90] sm:$0xff] %vm232, %v218
  %252 = vst.msk [vmem:[%s1 + $0x98] sm:$0xff] %vm232, %v219
  %253 = vst.msk [vmem:[%s1 + $0xa0] sm:$0xff] %vm232, %v220
  %254 = vst.msk [vmem:[%s1 + $0xa8] sm:$0xff] %vm232, %v221
  %255 = vst.msk [vmem:[%s1 + $0xb0] sm:$0xff] %vm232, %v222
  %256 = vst.msk [vmem:[%s1 + $0xb8] sm:$0xff] %vm232, %v223
  %257 = vst.msk [vmem:[%s1 + $0xc0] sm:$0xff] %vm232, %v224
  %258 = vst.msk [vmem:[%s1 + $0xc8] sm:$0xff] %vm232, %v225
  %259 = vst.msk [vmem:[%s1 + $0xd0] sm:$0xff] %vm232, %v226
  %260 = vst.msk [vmem:[%s1 + $0xd8] sm:$0xff] %vm232, %v227
  %261 = vst.msk [vmem:[%s1 + $0xe0] sm:$0xff] %vm232, %v228
  %262 = vst.msk [vmem:[%s1 + $0xe8] sm:$0xff] %vm232, %v229
  %263 = vst.msk [vmem:[%s1 + $0xf0] sm:$0xff] %vm232, %v230
  %264 = vst.msk [vmem:[%s1 + $0xf8] sm:$0xff] %vm232, %v231
  // Predicated region
  $region6: #{tpu_custom_call.1} parent=0 // pred_check
    _
  $region7: #{tpu_custom_call.1} parent=0 // pred_check_branch
    %266 = sbr.rel (0) target = $region9
  $region8: #{tpu_custom_call.1} parent=0 // pred_region
    _
  $region9: #{tpu_custom_call.1} parent=0 // pred_fallthru
    _
  // Predicated region
  $region10: #{tpu_custom_call.1} parent=0 // pred_check
    _
  $region11: #{tpu_custom_call.1} parent=0 // pred_check_branch
    %268 = sbr.rel (0) target = $region13
  $region12: #{tpu_custom_call.1} parent=0 // pred_region
    _
  $region13: #{tpu_custom_call.1} parent=0 // pred_fallthru
    _

</llo_original>
